<compile_context>
chip_gen: v5e
topology: v5e:2x2
jax: 0.10.0
libtpu: 0.0.40
codegen_flags: <defaults>
</compile_context>

<pallas_src>
import jax
import jax.numpy as jnp
from jax.experimental import pallas as pl
from jax.experimental.pallas import tpu as pltpu

B, IN, OUT = 1, 3, 8


def linear_add_kernel(x_ref, w_ref, c_ref, o_ref):
    # x_ref : (B, IN)  f32 scalars in SMEM
    # w_ref : (IN, OUT) f32 in VMEM (weight stored transposed: x @ W^T == x @ w_ref)
    # c_ref : (1, OUT)  f32 in VMEM (pre-fused bias + `other`)
    acc = c_ref[...]
    for i in range(IN):  # static unroll: 3 scalar-broadcast FMAs on the VPU
        acc = acc + x_ref[0, i] * w_ref[i : i + 1, :]
    o_ref[...] = acc


def linear_add(x, w_t, c):
    # Gridless single-invocation kernel: operands are tiny, everything fits in
    # one tile; x goes to SMEM (scalar path), vectors/outputs stay in VMEM.
    return pl.pallas_call(
        linear_add_kernel,
        out_shape=jax.ShapeDtypeStruct((B, OUT), jnp.float32),
        in_specs=[
            pl.BlockSpec(memory_space=pltpu.MemorySpace.SMEM),
            pl.BlockSpec(memory_space=pltpu.MemorySpace.VMEM),
            pl.BlockSpec(memory_space=pltpu.MemorySpace.VMEM),
        ],
        out_specs=pl.BlockSpec(memory_space=pltpu.MemorySpace.VMEM),
    )(x, w_t, c)


if __name__ == "__main__":
    key = jax.random.PRNGKey(0)
    k_x, k_w, k_b, k_o = jax.random.split(key, 4)

    # Deterministic parameter init (shapes from nn.Linear(3, 8)).
    x1 = jax.random.normal(k_x, (B, IN), dtype=jnp.float32)
    w = jax.random.normal(k_w, (OUT, IN), dtype=jnp.float32) * 0.1  # torch weight (out, in)
    b = jax.random.normal(k_b, (OUT,), dtype=jnp.float32) * 0.1
    other = jax.random.normal(k_o, (B, OUT), dtype=jnp.float32)     # the undefined `other`

    w_t = w.T                                   # (IN, OUT) so kernel computes x @ W^T
    c = b.reshape(1, OUT) + other               # fused bias + other, one operand

    out = linear_add(x1, w_t, c)
    jax.block_until_ready(out)

    # Reference check in plain JAX.
    ref = x1 @ w_t + b.reshape(1, OUT) + other
    assert jnp.allclose(out, ref, atol=1e-5), (out, ref)

    print("KERNEL_OK")
</pallas_src>

<mosaic_0001>
module attributes {stable_mosaic.version = 11 : i64} {
  func.func @linear_add_kernel(%arg0: memref<1x3xf32, #tpu.memory_space<smem>>, %arg1: memref<3x8xf32, #tpu.memory_space<vmem>>, %arg2: memref<1x8xf32, #tpu.memory_space<vmem>>, %arg3: memref<1x8xf32, #tpu.memory_space<vmem>>) attributes {dimension_semantics = [], scalar_prefetch = 0 : i64, scratch_operands = 0 : i64, tpu.core_type = #tpu.core_type<tc>} {
    %c0 = arith.constant 0 : index
    %c0_0 = arith.constant 0 : index
    %0 = vector.load %arg2[%c0, %c0_0] : memref<1x8xf32, #tpu.memory_space<vmem>>, vector<1x8xf32>
    %c0_1 = arith.constant 0 : index
    %c0_2 = arith.constant 0 : index
    %1 = memref.load %arg0[%c0_1, %c0_2] : memref<1x3xf32, #tpu.memory_space<smem>>
    %c0_3 = arith.constant 0 : index
    %c0_4 = arith.constant 0 : index
    %2 = vector.load %arg1[%c0_3, %c0_4] : memref<3x8xf32, #tpu.memory_space<vmem>>, vector<1x8xf32>
    %3 = vector.broadcast %1 : f32 to vector<1x8xf32>
    %4 = arith.mulf %3, %2 : vector<1x8xf32>
    %5 = arith.addf %0, %4 : vector<1x8xf32>
    %c0_5 = arith.constant 0 : index
    %c1 = arith.constant 1 : index
    %6 = memref.load %arg0[%c0_5, %c1] : memref<1x3xf32, #tpu.memory_space<smem>>
    %c1_6 = arith.constant 1 : index
    %c0_7 = arith.constant 0 : index
    %7 = vector.load %arg1[%c1_6, %c0_7] : memref<3x8xf32, #tpu.memory_space<vmem>>, vector<1x8xf32>
    %8 = vector.broadcast %6 : f32 to vector<1x8xf32>
    %9 = arith.mulf %8, %7 : vector<1x8xf32>
    %10 = arith.addf %5, %9 : vector<1x8xf32>
    %c0_8 = arith.constant 0 : index
    %c2 = arith.constant 2 : index
    %11 = memref.load %arg0[%c0_8, %c2] : memref<1x3xf32, #tpu.memory_space<smem>>
    %c2_9 = arith.constant 2 : index
    %c0_10 = arith.constant 0 : index
    %12 = vector.load %arg1[%c2_9, %c0_10] : memref<3x8xf32, #tpu.memory_space<vmem>>, vector<1x8xf32>
    %13 = vector.broadcast %11 : f32 to vector<1x8xf32>
    %14 = arith.mulf %13, %12 : vector<1x8xf32>
    %15 = arith.addf %10, %14 : vector<1x8xf32>
    %c0_11 = arith.constant 0 : index
    %c0_12 = arith.constant 0 : index
    %16 = vector.load %arg3[%c0_11, %c0_12] : memref<1x8xf32, #tpu.memory_space<vmem>>, vector<1x8xf32>
    tpu.vector_store %arg3[%c0_11, %c0_12], %15 {strides = array<i32>} : memref<1x8xf32, #tpu.memory_space<vmem>>, vector<1x8xf32>,
    return
  }
}

</mosaic_0001>

<llo_original>
// kernel: tpu_custom_call.1
$region0: #{tpu_custom_call.1}
  #allocation0 [shape = 'u32[]', space=smem, size = 0x4, offset = 0x4, fixed_abs, tag = 'smem constant byte address 0x4 - core index']
  #allocation1 [shape = 'u32[72,128]{1,0:T(1,128)}', space=vmem, size = 0x9000, scoped, tag = 'internal scratch']
  %s0 = inlined_call_operand.hbm [shape: f32[1,3], index: 0, kind: input, shape index: {}]
  %s1 = inlined_call_operand.hbm [shape: f32[3,8], index: 1, kind: input, shape index: {}]
  %s2 = inlined_call_operand.vmem [shape: f32[1,8], index: 2, kind: input, shape index: {}]
  %s3 = inlined_call_operand.hbm [shape: f32[1,8], index: 3, kind: output, shape index: {}]
  %s4 = sld [smem:[#allocation0]]
  $region30: #{tpu_custom_call.1} parent=0
    _
  %s6 = ssub.s32 1, %s4
  %s7 = scalar_select 0, %s6, %s4
  $region1: #{tpu_custom_call.1} parent=0
    #allocation2 [shape = 'u8[512]{0}', space=smem, size = 0x200, scoped, tag = 'input window, operand 0, single buffered']
    #allocation3 [shape = 's32[1]{0}', space=sflag, size = 0x4, scoped, tag = 'scoped memory for tpu_custom_call.1']
    #allocation4 [shape = 's32[1]{0}', space=sflag, size = 0x4, scoped, tag = 'scoped memory for tpu_custom_call.1']
    #allocation5 [shape = 's32[1]{0}', space=sflag, size = 0x4, scoped, tag = 'scoped memory for tpu_custom_call.1']
    #allocation6 [shape = 'u8[2048]{0}', space=vmem, size = 0x800, scoped, tag = 'input window, operand 1, single buffered']
    #allocation7 [shape = 'u8[512]{0}', space=vmem, size = 0x400, scoped, tag = 'output window, operand 0, single buffered']
    %8 = vsyncpa [#allocation5], 0
    %9 = vsyncpa [#allocation3], 0
    %10 = vsyncpa [#allocation4], 0
    // Predicated region
    $region2: #{tpu_custom_call.1} parent=1 // pred_check
      _
    $region3: #{tpu_custom_call.1} parent=1 // pred_check_branch
      %12 = sbr.rel (0) target = $region5
    $region4: #{tpu_custom_call.1} parent=1 // pred_region
      %14 = vsyncadd [#allocation5], 0
      %s16 = sshll.u32 %s0, 4
      %s17 = int_to_ptr.hbm [resolvable:$true] %s16
      %19 = dma.hbm_to_smem %s17, 16, [#allocation2], [#allocation5]
    $region5: #{tpu_custom_call.1} parent=1 // pred_fallthru
      _
    // Predicated region
    $region6: #{tpu_custom_call.1} parent=1 // pred_check
      _
    $region7: #{tpu_custom_call.1} parent=1 // pred_check_branch
      %21 = sbr.rel (0) target = $region9
    $region8: #{tpu_custom_call.1} parent=1 // pred_region
      %23 = vsyncadd [#allocation3], 0
      %s25 = sshll.u32 %s1, 4
      %s26 = int_to_ptr.hbm [resolvable:$true] %s25
      %s27 = sshll.u32 [#allocation6], 4
      %s28 = int_to_ptr.vmem [resolvable:$true] %s27
      %30 = dma.hbm_to_vmem [thread:$0]  %s26, 64, %s28, [#allocation3]
    $region9: #{tpu_custom_call.1} parent=1 // pred_fallthru
      _
    // Predicated region
    $region10: #{tpu_custom_call.1} parent=1 // pred_check
      _
    $region11: #{tpu_custom_call.1} parent=1 // pred_check_branch
      %32 = sbr.rel (0) target = $region13
    $region12: #{tpu_custom_call.1} parent=1 // pred_region
      _
    $region13: #{tpu_custom_call.1} parent=1 // pred_fallthru
      _
    // Predicated region
    $region14: #{tpu_custom_call.1} parent=1 // pred_check
      _
    $region15: #{tpu_custom_call.1} parent=1 // pred_check_branch
      %34 = sbr.rel (0) target = $region17
    $region16: #{tpu_custom_call.1} parent=1 // pred_region
      %36 = dma.done [#allocation5], 16
    $region17: #{tpu_custom_call.1} parent=1 // pred_fallthru
      _
    // Predicated region
    $region18: #{tpu_custom_call.1} parent=1 // pred_check
      _
    $region19: #{tpu_custom_call.1} parent=1 // pred_check_branch
      %38 = sbr.rel (0) target = $region21
    $region20: #{tpu_custom_call.1} parent=1 // pred_region
      %40 = dma.done [#allocation3], 64
    $region21: #{tpu_custom_call.1} parent=1 // pred_fallthru
      _
    %41 = sfence
    %v42 = vld [vmem:[%s2] sm:$0x1]
    %s43 = sld [smem:[#allocation2]]
    %v44 = vld [vmem:[#allocation6] sm:$0x1]
    %v45 = vstv %s43
    %v46 = vmul.f32 %v45, %v44
    %v47 = vadd.f32 %v42, %v46
    %s48 = sld [smem:[#allocation2 + $0x1]]
    %v49 = vld [vmem:[#allocation6 + $0x1] sm:$0x1]
    %v50 = vstv %s48
    %v51 = vmul.f32 %v50, %v49
    %v52 = vadd.f32 %v47, %v51
    %s53 = sld [smem:[#allocation2 + $0x2]]
    %v54 = vld [vmem:[#allocation6 + $0x2] sm:$0x1]
    %v55 = vstv %s53
    %v56 = vmul.f32 %v55, %v54
    %v57 = vadd.f32 %v52, %v56
    %vm58 = vcmask 57344
    %59 = vst.msk [vmem:[#allocation7] sm:$0x1] %vm58, %v57
    // Predicated region
    $region22: #{tpu_custom_call.1} parent=1 // pred_check
      _
    $region23: #{tpu_custom_call.1} parent=1 // pred_check_branch
      %61 = sbr.rel (0) target = $region25
    $region24: #{tpu_custom_call.1} parent=1 // pred_region
      %63 = vsyncadd [#allocation4], 0
      %s65 = sshll.u32 [#allocation7], 4
      %s66 = int_to_ptr.vmem [resolvable:$true] %s65
      %s67 = sshll.u32 %s3, 4
      %s68 = int_to_ptr.hbm [resolvable:$true] %s67
      %70 = dma.vmem_to_hbm [thread:$0]  %s66, 16, %s68, [#allocation4]
    $region25: #{tpu_custom_call.1} parent=1 // pred_fallthru
      _
    // Predicated region
    $region26: #{tpu_custom_call.1} parent=1 // pred_check
      _
    $region27: #{tpu_custom_call.1} parent=1 // pred_check_branch
      %72 = sbr.rel (0) target = $region29
    $region28: #{tpu_custom_call.1} parent=1 // pred_region
      %74 = dma.done [#allocation4], 16
    $region29: #{tpu_custom_call.1} parent=1 // pred_fallthru
      _
    %75 = vsyncpa [#allocation3], 1
    %76 = vsyncpa [#allocation4], 1
    %77 = vsyncpa [#allocation5], 1

</llo_original>
